<compile_context>
chip_gen: v5e
topology: v5e:2x2
jax: 0.10.0
libtpu: 0.0.40
codegen_flags: <defaults>
</compile_context>

<pallas_src>
import functools

import jax
import jax.numpy as jnp
from jax import lax
from jax.experimental import pallas as pl
from jax.experimental.pallas import tpu as pltpu

# torchvision vgg16 "features" configuration (13 convs, 5 maxpools).
VGG16_CFG = [64, 64, "M", 128, 128, "M", 256, 256, 256, "M",
             512, 512, 512, "M", 512, 512, 512, "M"]


def _round_up(x, m):
    return (x + m - 1) // m * m


def _vmem_limit_bytes():
    # Re-derive per generation (v5e/v6e: 128 MiB, v7x: 64 MiB per TC).
    cap = 64 * 1024 * 1024  # conservative fallback = v7x per-core VMEM
    try:
        cap = int(pltpu.get_tpu_info().vmem_capacity_bytes)
    except Exception:
        pass
    return int(min(cap * 3 // 4, 96 * 1024 * 1024))


# ---------------- 3x3 conv (stride 1, pad 1) + ReLU -----------------------

def _conv3x3_relu_kernel(x_ref, w_ref, b_ref, o_ref, *, Wp, Np, Cin, grouped):
    # x_ref: (1, L_in, Cin) f32 zero-padded image, rows flattened (row width Wp)
    # w_ref: (3, 3*Cin, Cout) bf16 if grouped else (3, 3, Cin, Cout) bf16
    # b_ref: (1, Cout) f32;  o_ref: (1, Np, Cout) f32
    t = pl.program_id(1)
    base = t * Np
    cout = o_ref.shape[2]
    acc = jnp.zeros((Np, cout), jnp.float32)
    for dy in range(3):
        row = base + dy * Wp
        if grouped:
            # Pair dx=0,1 taps along the contraction axis (K = 2*Cin = 256):
            # lane-aligned concat, halves the accumulator RMW passes and fills
            # the 256-wide MXU.
            p01 = jnp.concatenate(
                [x_ref[0, pl.ds(row, Np), :],
                 x_ref[0, pl.ds(row + 1, Np), :]], axis=-1).astype(jnp.bfloat16)
            acc = acc + jnp.dot(p01, w_ref[dy, :2 * Cin, :],
                                preferred_element_type=jnp.float32)
            p2 = x_ref[0, pl.ds(row + 2, Np), :].astype(jnp.bfloat16)
            acc = acc + jnp.dot(p2, w_ref[dy, 2 * Cin:, :],
                                preferred_element_type=jnp.float32)
        else:
            for dx in range(3):
                patch = x_ref[0, pl.ds(row + dx, Np), :].astype(jnp.bfloat16)
                acc = acc + jnp.dot(patch, w_ref[dy, dx],
                                    preferred_element_type=jnp.float32)
    acc = acc + b_ref[...]
    o_ref[0] = jnp.maximum(acc, 0.0)


def conv3x3_relu(x, w_bf16, b, *, block_rows=1024):
    # x: (B, H, W, Cin) f32;  w_bf16: (3, 3, Cin, Cout) bf16;  b: (Cout,) f32
    B, H, W, Cin = x.shape
    Cout = w_bf16.shape[-1]
    Wp = W + 2
    L_out = H * Wp                                    # flat output positions
    # keep the f32 accumulator tile at <= ~512 KiB (review: acc >> vreg file)
    np_cap = max(256, (512 * 1024) // (4 * Cout))
    Np = min(block_rows, np_cap, _round_up(L_out, 8))
    Np = _round_up(Np, 8)
    T = pl.cdiv(L_out, Np)
    L_need = T * Np + 2 * Wp + 2                      # rows the kernel may touch
    eh = (L_need - (H + 2) * Wp + Wp - 1) // Wp       # extra zero rows at bottom

    # single fused pad: 1 halo row top, (1 + eh) bottom, 1 col left/right
    xp = jnp.pad(x, ((0, 0), (1, 1 + eh), (1, 1), (0, 0)))
    L_in = (H + 2 + eh) * Wp
    xf = xp.reshape(B, L_in, Cin)
    b2 = b.reshape(1, Cout)

    grouped = (Cin == 128)  # pair dx-taps only when the concat stays lane-aligned
    if grouped:
        wk = w_bf16.reshape(3, 3 * Cin, Cout)
        w_spec = pl.BlockSpec((3, 3 * Cin, Cout), lambda bb, t: (0, 0, 0))
    else:
        wk = w_bf16
        w_spec = pl.BlockSpec((3, 3, Cin, Cout), lambda bb, t: (0, 0, 0, 0))

    out_flat = pl.pallas_call(
        functools.partial(_conv3x3_relu_kernel, Wp=Wp, Np=Np, Cin=Cin,
                          grouped=grouped),
        out_shape=jax.ShapeDtypeStruct((B, T * Np, Cout), jnp.float32),
        grid=(B, T),
        in_specs=[
            # full padded image stays resident in VMEM while t sweeps
            pl.BlockSpec((1, L_in, Cin), lambda bb, t: (bb, 0, 0)),
            w_spec,
            pl.BlockSpec((1, Cout), lambda bb, t: (0, 0)),
        ],
        out_specs=pl.BlockSpec((1, Np, Cout), lambda bb, t: (bb, t, 0)),
        compiler_params=pltpu.CompilerParams(
            dimension_semantics=("parallel", "parallel"),
            vmem_limit_bytes=_vmem_limit_bytes()),
    )(xf, wk, b2)

    # drop junk columns (flat positions with w >= W) and extra padded rows;
    # XLA fuses this slice with the next layer's pad (single data-movement pass).
    out = out_flat[:, :L_out, :].reshape(B, H, Wp, Cout)[:, :, :W, :]
    return out


# ---------------- 2x2 max-pool, stride 2 -----------------------------------

def _maxpool_kernel(x_ref, o_ref):
    # x_ref: (1, hp, 2, Wo, 2C); o_ref: (1, hp, Wo, C)
    a = x_ref[0, :, 0]                      # even input rows  (hp, Wo, 2C)
    b = x_ref[0, :, 1]                      # odd  input rows
    r = jnp.maximum(a, b)
    C = o_ref.shape[3]
    o_ref[0] = jnp.maximum(r[:, :, :C], r[:, :, C:])


def maxpool2x2(x, *, max_block_elems=1 << 20):
    # x: (B, H, W, C) f32, H and W even
    B, H, W, C = x.shape
    Ho, Wo = H // 2, W // 2
    # free reshape (contiguous reinterpretation): no transpose copy in XLA
    z = x.reshape(B, Ho, 2, Wo, 2 * C)
    hp = 1
    for d in range(Ho, 0, -1):
        if Ho % d == 0 and 4 * d * Wo * C <= max_block_elems:
            hp = d
            break
    return pl.pallas_call(
        _maxpool_kernel,
        out_shape=jax.ShapeDtypeStruct((B, Ho, Wo, C), jnp.float32),
        grid=(B, Ho // hp),
        in_specs=[pl.BlockSpec((1, hp, 2, Wo, 2 * C),
                               lambda bb, i: (bb, i, 0, 0, 0))],
        out_specs=pl.BlockSpec((1, hp, Wo, C), lambda bb, i: (bb, i, 0, 0)),
        compiler_params=pltpu.CompilerParams(
            dimension_semantics=("parallel", "parallel"),
            vmem_limit_bytes=_vmem_limit_bytes()),
    )(z)


# ---------------- fused ELU-MLP head (25088 -> 100 -> 50 -> 10 -> 1) -------

def _mlp_kernel(x_ref, w1, b1, w2, b2, w3, b3, w4, b4, o_ref):
    def elu(v):  # F.elu, alpha = 1
        return jnp.where(v > 0, v, jnp.exp(jnp.minimum(v, 0.0)) - 1.0)
    # x / w1 are bf16 (halves the 10 MB dense1 weight DMA); accumulate in f32.
    h = elu(jnp.dot(x_ref[...], w1[...], preferred_element_type=jnp.float32) + b1[...])
    h = elu(jnp.dot(h, w2[...], preferred_element_type=jnp.float32) + b2[...])
    h = elu(jnp.dot(h, w3[...], preferred_element_type=jnp.float32) + b3[...])
    o_ref[...] = jnp.dot(h, w4[...], preferred_element_type=jnp.float32) + b4[...]


def mlp_head(feat_bf16, dense_params):
    # feat_bf16: (B, 25088) bf16
    B = feat_bf16.shape[0]
    flat = [feat_bf16]
    for (w, b) in dense_params:
        flat.extend([w, b.reshape(1, -1)])
    in_specs = [pl.BlockSpec(a.shape, (lambda i, n=a.ndim: (0,) * n)) for a in flat]
    return pl.pallas_call(
        _mlp_kernel,
        out_shape=jax.ShapeDtypeStruct((B, 1), jnp.float32),
        grid=(1,),
        in_specs=in_specs,
        out_specs=pl.BlockSpec((B, 1), lambda i: (0, 0)),
        compiler_params=pltpu.CompilerParams(
            dimension_semantics=("arbitrary",),
            vmem_limit_bytes=_vmem_limit_bytes()),
    )(*flat)


# ---------------- parameters & full forward --------------------------------

def init_params(key):
    # TODO(synk): torchvision pretrained VGG16 weights cannot be loaded here;
    # deterministic He-style synthetic init with matching shapes instead.
    conv_params = []
    cin = 3
    for v in VGG16_CFG:
        if v == "M":
            continue
        key, kw = jax.random.split(key)
        std = (2.0 / (9 * cin)) ** 0.5
        w = (std * jax.random.normal(kw, (3, 3, cin, v), jnp.float32)
             ).astype(jnp.bfloat16)
        conv_params.append((w, jnp.zeros((v,), jnp.float32)))
        cin = v
    dense_params = []
    for li, (fi, fo) in enumerate([(25088, 100), (100, 50), (50, 10), (10, 1)]):
        key, kw = jax.random.split(key)
        std = (1.0 / fi) ** 0.5
        w = std * jax.random.normal(kw, (fi, fo), jnp.float32)
        if li == 0:
            w = w.astype(jnp.bfloat16)    # big weight: ship at half the bytes
        dense_params.append((w, jnp.zeros((fo,), jnp.float32)))
    return conv_params, dense_params


def forward(x_nchw, conv_params, dense_params):
    x = jnp.transpose(x_nchw, (0, 2, 3, 1)).astype(jnp.float32)   # NCHW -> NHWC
    ci = 0
    for v in VGG16_CFG:
        if v == "M":
            x = maxpool2x2(x)
        else:
            w, b = conv_params[ci]
            ci += 1
            x = conv3x3_relu(x, w, b)
    # x: (B, 7, 7, 512) NHWC; match torch's .view on NCHW features (C*H*W order)
    feat = jnp.transpose(x, (0, 3, 1, 2)).reshape(x.shape[0], -1)
    return mlp_head(feat.astype(jnp.bfloat16), dense_params)


if __name__ == "__main__":
    root = jax.random.PRNGKey(0)
    kp, k1, k2, k3, k4, kx = jax.random.split(root, 6)
    conv_params, dense_params = init_params(kp)

    # --- kernel sanity checks against XLA references (tightened tolerance) ---
    xt = jax.random.normal(k1, (2, 8, 8, 3), jnp.float32)
    wt = (0.1 * jax.random.normal(k2, (3, 3, 3, 8), jnp.float32)).astype(jnp.bfloat16)
    bt = 0.1 * jax.random.normal(k3, (8,), jnp.float32)
    got = conv3x3_relu(xt, wt, bt)
    # kernel rounds matmul operands to bf16 -> compare against the exact f32
    # conv of the bf16-rounded operands (expected diff ~1e-6 from sum order).
    xt_r = xt.astype(jnp.bfloat16).astype(jnp.float32)
    ref = jnp.maximum(
        lax.conv_general_dilated(xt_r, wt.astype(jnp.float32), (1, 1), "SAME",
                                 dimension_numbers=("NHWC", "HWIO", "NHWC")) + bt, 0.0)
    assert float(jnp.max(jnp.abs(got - ref))) < 5e-4, "conv kernel mismatch"

    xpool = jax.random.normal(k4, (2, 8, 8, 64), jnp.float32)
    got_p = maxpool2x2(xpool)
    ref_p = lax.reduce_window(xpool, -jnp.inf, lax.max,
                              (1, 2, 2, 1), (1, 2, 2, 1), "VALID")
    assert float(jnp.max(jnp.abs(got_p - ref_p))) < 1e-6, "maxpool kernel mismatch"

    # --- full model: batch=2, NCHW 224x224 RGB (required by the 25088-wide dense1)
    x = jax.random.normal(kx, (2, 3, 224, 224), jnp.float32)
    fwd = jax.jit(forward)
    out = jax.block_until_ready(fwd(x, conv_params, dense_params))
    assert out.shape == (2, 1)
    assert bool(jnp.all(jnp.isfinite(out)))
    print("KERNEL_OK")
</pallas_src>

<mosaic_0001>
module attributes {stable_mosaic.version = 11 : i64} {
  func.func @_conv3x3_relu_kernel(%arg0: i32, %arg1: i32, %arg2: memref<1x110x3xf32, #tpu.memory_space<vmem>>, %arg3: memref<3x3x3x8xbf16, #tpu.memory_space<vmem>>, %arg4: memref<1x8xf32, #tpu.memory_space<vmem>>, %arg5: memref<1x80x8xf32, #tpu.memory_space<vmem>>) attributes {dimension_semantics = [#tpu.dimension_semantics<parallel>, #tpu.dimension_semantics<parallel>], iteration_bounds = array<i64: 2, 1>, scalar_prefetch = 0 : i64, scratch_operands = 0 : i64, tpu.core_type = #tpu.core_type<tc>, window_params = [{transform_indices = @transform_0, window_bounds = array<i64: 1, 110, 3>}, {pipeline_mode = #tpu.pipeline_mode<synchronous>, transform_indices = @transform_1, window_bounds = array<i64: 3, 3, 3, 8>}, {pipeline_mode = #tpu.pipeline_mode<synchronous>, transform_indices = @transform_2, window_bounds = array<i64: 1, 8>}, {transform_indices = @transform_3, window_bounds = array<i64: 1, 80, 8>}]} {
    %c80_i32 = arith.constant 80 : i32
    %0 = arith.muli %arg1, %c80_i32 : i32
    %cst = arith.constant 0.000000e+00 : f32
    %1 = vector.broadcast %cst : f32 to vector<80x8xf32>
    %c0_i32 = arith.constant 0 : i32
    %2 = arith.addi %0, %c0_i32 : i32
    %c0_i32_0 = arith.constant 0 : i32
    %3 = arith.addi %2, %c0_i32_0 : i32
    %c0 = arith.constant 0 : index
    %4 = arith.index_cast %3 : i32 to index
    %c0_1 = arith.constant 0 : index
    %5 = vector.load %arg2[%c0, %4, %c0_1] : memref<1x110x3xf32, #tpu.memory_space<vmem>>, vector<1x80x3xf32>
    %6 = vector.shape_cast %5 : vector<1x80x3xf32> to vector<80x3xf32>
    %7 = arith.truncf %6 : vector<80x3xf32> to vector<80x3xbf16>
    %c0_2 = arith.constant 0 : index
    %c0_3 = arith.constant 0 : index
    %c0_4 = arith.constant 0 : index
    %c0_5 = arith.constant 0 : index
    %8 = vector.load %arg3[%c0_2, %c0_3, %c0_4, %c0_5] : memref<3x3x3x8xbf16, #tpu.memory_space<vmem>>, vector<1x1x3x8xbf16>
    %9 = vector.shape_cast %8 : vector<1x1x3x8xbf16> to vector<3x8xbf16>
    %cst_6 = arith.constant dense<0.000000e+00> : vector<80x8xf32>
    %10 = tpu.matmul %7, %9, %cst_6 {dimension_numbers = #tpu.dot_dimension_numbers<[1], [0], [0], [1], [0, 0, 1, 1], [], []>} : vector<80x3xbf16>, vector<3x8xbf16>, vector<80x8xf32> -> vector<80x8xf32>
    %11 = arith.addf %1, %10 : vector<80x8xf32>
    %c1_i32 = arith.constant 1 : i32
    %12 = arith.addi %2, %c1_i32 : i32
    %c0_7 = arith.constant 0 : index
    %13 = arith.index_cast %12 : i32 to index
    %c0_8 = arith.constant 0 : index
    %14 = vector.load %arg2[%c0_7, %13, %c0_8] : memref<1x110x3xf32, #tpu.memory_space<vmem>>, vector<1x80x3xf32>
    %15 = vector.shape_cast %14 : vector<1x80x3xf32> to vector<80x3xf32>
    %16 = arith.truncf %15 : vector<80x3xf32> to vector<80x3xbf16>
    %c0_9 = arith.constant 0 : index
    %c1 = arith.constant 1 : index
    %c0_10 = arith.constant 0 : index
    %c0_11 = arith.constant 0 : index
    %17 = vector.load %arg3[%c0_9, %c1, %c0_10, %c0_11] : memref<3x3x3x8xbf16, #tpu.memory_space<vmem>>, vector<1x1x3x8xbf16>
    %18 = vector.shape_cast %17 : vector<1x1x3x8xbf16> to vector<3x8xbf16>
    %cst_12 = arith.constant dense<0.000000e+00> : vector<80x8xf32>
    %19 = tpu.matmul %16, %18, %cst_12 {dimension_numbers = #tpu.dot_dimension_numbers<[1], [0], [0], [1], [0, 0, 1, 1], [], []>} : vector<80x3xbf16>, vector<3x8xbf16>, vector<80x8xf32> -> vector<80x8xf32>
    %20 = arith.addf %11, %19 : vector<80x8xf32>
    %c2_i32 = arith.constant 2 : i32
    %21 = arith.addi %2, %c2_i32 : i32
    %c0_13 = arith.constant 0 : index
    %22 = arith.index_cast %21 : i32 to index
    %c0_14 = arith.constant 0 : index
    %23 = vector.load %arg2[%c0_13, %22, %c0_14] : memref<1x110x3xf32, #tpu.memory_space<vmem>>, vector<1x80x3xf32>
    %24 = vector.shape_cast %23 : vector<1x80x3xf32> to vector<80x3xf32>
    %25 = arith.truncf %24 : vector<80x3xf32> to vector<80x3xbf16>
    %c0_15 = arith.constant 0 : index
    %c2 = arith.constant 2 : index
    %c0_16 = arith.constant 0 : index
    %c0_17 = arith.constant 0 : index
    %26 = vector.load %arg3[%c0_15, %c2, %c0_16, %c0_17] : memref<3x3x3x8xbf16, #tpu.memory_space<vmem>>, vector<1x1x3x8xbf16>
    %27 = vector.shape_cast %26 : vector<1x1x3x8xbf16> to vector<3x8xbf16>
    %cst_18 = arith.constant dense<0.000000e+00> : vector<80x8xf32>
    %28 = tpu.matmul %25, %27, %cst_18 {dimension_numbers = #tpu.dot_dimension_numbers<[1], [0], [0], [1], [0, 0, 1, 1], [], []>} : vector<80x3xbf16>, vector<3x8xbf16>, vector<80x8xf32> -> vector<80x8xf32>
    %29 = arith.addf %20, %28 : vector<80x8xf32>
    %c10_i32 = arith.constant 10 : i32
    %30 = arith.addi %0, %c10_i32 : i32
    %c0_i32_19 = arith.constant 0 : i32
    %31 = arith.addi %30, %c0_i32_19 : i32
    %c0_20 = arith.constant 0 : index
    %32 = arith.index_cast %31 : i32 to index
    %c0_21 = arith.constant 0 : index
    %33 = vector.load %arg2[%c0_20, %32, %c0_21] : memref<1x110x3xf32, #tpu.memory_space<vmem>>, vector<1x80x3xf32>
    %34 = vector.shape_cast %33 : vector<1x80x3xf32> to vector<80x3xf32>
    %35 = arith.truncf %34 : vector<80x3xf32> to vector<80x3xbf16>
    %c1_22 = arith.constant 1 : index
    %c0_23 = arith.constant 0 : index
    %c0_24 = arith.constant 0 : index
    %c0_25 = arith.constant 0 : index
    %36 = vector.load %arg3[%c1_22, %c0_23, %c0_24, %c0_25] : memref<3x3x3x8xbf16, #tpu.memory_space<vmem>>, vector<1x1x3x8xbf16>
    %37 = vector.shape_cast %36 : vector<1x1x3x8xbf16> to vector<3x8xbf16>
    %cst_26 = arith.constant dense<0.000000e+00> : vector<80x8xf32>
    %38 = tpu.matmul %35, %37, %cst_26 {dimension_numbers = #tpu.dot_dimension_numbers<[1], [0], [0], [1], [0, 0, 1, 1], [], []>} : vector<80x3xbf16>, vector<3x8xbf16>, vector<80x8xf32> -> vector<80x8xf32>
    %39 = arith.addf %29, %38 : vector<80x8xf32>
    %c1_i32_27 = arith.constant 1 : i32
    %40 = arith.addi %30, %c1_i32_27 : i32
    %c0_28 = arith.constant 0 : index
    %41 = arith.index_cast %40 : i32 to index
    %c0_29 = arith.constant 0 : index
    %42 = vector.load %arg2[%c0_28, %41, %c0_29] : memref<1x110x3xf32, #tpu.memory_space<vmem>>, vector<1x80x3xf32>
    %43 = vector.shape_cast %42 : vector<1x80x3xf32> to vector<80x3xf32>
    %44 = arith.truncf %43 : vector<80x3xf32> to vector<80x3xbf16>
    %c1_30 = arith.constant 1 : index
    %c1_31 = arith.constant 1 : index
    %c0_32 = arith.constant 0 : index
    %c0_33 = arith.constant 0 : index
    %45 = vector.load %arg3[%c1_30, %c1_31, %c0_32, %c0_33] : memref<3x3x3x8xbf16, #tpu.memory_space<vmem>>, vector<1x1x3x8xbf16>
    %46 = vector.shape_cast %45 : vector<1x1x3x8xbf16> to vector<3x8xbf16>
    %cst_34 = arith.constant dense<0.000000e+00> : vector<80x8xf32>
    %47 = tpu.matmul %44, %46, %cst_34 {dimension_numbers = #tpu.dot_dimension_numbers<[1], [0], [0], [1], [0, 0, 1, 1], [], []>} : vector<80x3xbf16>, vector<3x8xbf16>, vector<80x8xf32> -> vector<80x8xf32>
    %48 = arith.addf %39, %47 : vector<80x8xf32>
    %c2_i32_35 = arith.constant 2 : i32
    %49 = arith.addi %30, %c2_i32_35 : i32
    %c0_36 = arith.constant 0 : index
    %50 = arith.index_cast %49 : i32 to index
    %c0_37 = arith.constant 0 : index
    %51 = vector.load %arg2[%c0_36, %50, %c0_37] : memref<1x110x3xf32, #tpu.memory_space<vmem>>, vector<1x80x3xf32>
    %52 = vector.shape_cast %51 : vector<1x80x3xf32> to vector<80x3xf32>
    %53 = arith.truncf %52 : vector<80x3xf32> to vector<80x3xbf16>
    %c1_38 = arith.constant 1 : index
    %c2_39 = arith.constant 2 : index
    %c0_40 = arith.constant 0 : index
    %c0_41 = arith.constant 0 : index
    %54 = vector.load %arg3[%c1_38, %c2_39, %c0_40, %c0_41] : memref<3x3x3x8xbf16, #tpu.memory_space<vmem>>, vector<1x1x3x8xbf16>
    %55 = vector.shape_cast %54 : vector<1x1x3x8xbf16> to vector<3x8xbf16>
    %cst_42 = arith.constant dense<0.000000e+00> : vector<80x8xf32>
    %56 = tpu.matmul %53, %55, %cst_42 {dimension_numbers = #tpu.dot_dimension_numbers<[1], [0], [0], [1], [0, 0, 1, 1], [], []>} : vector<80x3xbf16>, vector<3x8xbf16>, vector<80x8xf32> -> vector<80x8xf32>
    %57 = arith.addf %48, %56 : vector<80x8xf32>
    %c20_i32 = arith.constant 20 : i32
    %58 = arith.addi %0, %c20_i32 : i32
    %c0_i32_43 = arith.constant 0 : i32
    %59 = arith.addi %58, %c0_i32_43 : i32
    %c0_44 = arith.constant 0 : index
    %60 = arith.index_cast %59 : i32 to index
    %c0_45 = arith.constant 0 : index
    %61 = vector.load %arg2[%c0_44, %60, %c0_45] : memref<1x110x3xf32, #tpu.memory_space<vmem>>, vector<1x80x3xf32>
    %62 = vector.shape_cast %61 : vector<1x80x3xf32> to vector<80x3xf32>
    %63 = arith.truncf %62 : vector<80x3xf32> to vector<80x3xbf16>
    %c2_46 = arith.constant 2 : index
    %c0_47 = arith.constant 0 : index
    %c0_48 = arith.constant 0 : index
    %c0_49 = arith.constant 0 : index
    %64 = vector.load %arg3[%c2_46, %c0_47, %c0_48, %c0_49] : memref<3x3x3x8xbf16, #tpu.memory_space<vmem>>, vector<1x1x3x8xbf16>
    %65 = vector.shape_cast %64 : vector<1x1x3x8xbf16> to vector<3x8xbf16>
    %cst_50 = arith.constant dense<0.000000e+00> : vector<80x8xf32>
    %66 = tpu.matmul %63, %65, %cst_50 {dimension_numbers = #tpu.dot_dimension_numbers<[1], [0], [0], [1], [0, 0, 1, 1], [], []>} : vector<80x3xbf16>, vector<3x8xbf16>, vector<80x8xf32> -> vector<80x8xf32>
    %67 = arith.addf %57, %66 : vector<80x8xf32>
    %c1_i32_51 = arith.constant 1 : i32
    %68 = arith.addi %58, %c1_i32_51 : i32
    %c0_52 = arith.constant 0 : index
    %69 = arith.index_cast %68 : i32 to index
    %c0_53 = arith.constant 0 : index
    %70 = vector.load %arg2[%c0_52, %69, %c0_53] : memref<1x110x3xf32, #tpu.memory_space<vmem>>, vector<1x80x3xf32>
    %71 = vector.shape_cast %70 : vector<1x80x3xf32> to vector<80x3xf32>
    %72 = arith.truncf %71 : vector<80x3xf32> to vector<80x3xbf16>
    %c2_54 = arith.constant 2 : index
    %c1_55 = arith.constant 1 : index
    %c0_56 = arith.constant 0 : index
    %c0_57 = arith.constant 0 : index
    %73 = vector.load %arg3[%c2_54, %c1_55, %c0_56, %c0_57] : memref<3x3x3x8xbf16, #tpu.memory_space<vmem>>, vector<1x1x3x8xbf16>
    %74 = vector.shape_cast %73 : vector<1x1x3x8xbf16> to vector<3x8xbf16>
    %cst_58 = arith.constant dense<0.000000e+00> : vector<80x8xf32>
    %75 = tpu.matmul %72, %74, %cst_58 {dimension_numbers = #tpu.dot_dimension_numbers<[1], [0], [0], [1], [0, 0, 1, 1], [], []>} : vector<80x3xbf16>, vector<3x8xbf16>, vector<80x8xf32> -> vector<80x8xf32>
    %76 = arith.addf %67, %75 : vector<80x8xf32>
    %c2_i32_59 = arith.constant 2 : i32
    %77 = arith.addi %58, %c2_i32_59 : i32
    %c0_60 = arith.constant 0 : index
    %78 = arith.index_cast %77 : i32 to index
    %c0_61 = arith.constant 0 : index
    %79 = vector.load %arg2[%c0_60, %78, %c0_61] : memref<1x110x3xf32, #tpu.memory_space<vmem>>, vector<1x80x3xf32>
    %80 = vector.shape_cast %79 : vector<1x80x3xf32> to vector<80x3xf32>
    %81 = arith.truncf %80 : vector<80x3xf32> to vector<80x3xbf16>
    %c2_62 = arith.constant 2 : index
    %c2_63 = arith.constant 2 : index
    %c0_64 = arith.constant 0 : index
    %c0_65 = arith.constant 0 : index
    %82 = vector.load %arg3[%c2_62, %c2_63, %c0_64, %c0_65] : memref<3x3x3x8xbf16, #tpu.memory_space<vmem>>, vector<1x1x3x8xbf16>
    %83 = vector.shape_cast %82 : vector<1x1x3x8xbf16> to vector<3x8xbf16>
    %cst_66 = arith.constant dense<0.000000e+00> : vector<80x8xf32>
    %84 = tpu.matmul %81, %83, %cst_66 {dimension_numbers = #tpu.dot_dimension_numbers<[1], [0], [0], [1], [0, 0, 1, 1], [], []>} : vector<80x3xbf16>, vector<3x8xbf16>, vector<80x8xf32> -> vector<80x8xf32>
    %85 = arith.addf %76, %84 : vector<80x8xf32>
    %c0_67 = arith.constant 0 : index
    %c0_68 = arith.constant 0 : index
    %86 = vector.load %arg4[%c0_67, %c0_68] : memref<1x8xf32, #tpu.memory_space<vmem>>, vector<1x8xf32>
    %87 = vector.broadcast %86 : vector<1x8xf32> to vector<80x8xf32>
    %88 = arith.addf %85, %87 : vector<80x8xf32>
    %cst_69 = arith.constant 0.000000e+00 : f32
    %89 = vector.broadcast %cst_69 : f32 to vector<80x8xf32>
    %90 = arith.maximumf %88, %89 : vector<80x8xf32>
    %c0_70 = arith.constant 0 : index
    %c0_71 = arith.constant 0 : index
    %c0_72 = arith.constant 0 : index
    %91 = vector.load %arg5[%c0_70, %c0_71, %c0_72] : memref<1x80x8xf32, #tpu.memory_space<vmem>>, vector<1x80x8xf32>
    %92 = vector.shape_cast %91 : vector<1x80x8xf32> to vector<80x8xf32>
    %93 = vector.shape_cast %90 : vector<80x8xf32> to vector<1x80x8xf32>
    tpu.vector_store %arg5[%c0_70, %c0_71, %c0_72], %93 {strides = array<i32>} : memref<1x80x8xf32, #tpu.memory_space<vmem>>, vector<1x80x8xf32>,
    return
  }
  func.func @transform_0(%arg0: i32, %arg1: i32) -> (i32, i32, i32) {
    %c0_i32 = arith.constant 0 : i32
    %c0_i32_0 = arith.constant 0 : i32
    %c0_i32_1 = arith.constant 0 : i32
    return %arg0, %c0_i32, %c0_i32_0 : i32, i32, i32
  }
  func.func @transform_1(%arg0: i32, %arg1: i32) -> (i32, i32, i32, i32) {
    %c0_i32 = arith.constant 0 : i32
    %c0_i32_0 = arith.constant 0 : i32
    %c0_i32_1 = arith.constant 0 : i32
    %c0_i32_2 = arith.constant 0 : i32
    %c0_i32_3 = arith.constant 0 : i32
    return %c0_i32, %c0_i32_0, %c0_i32_1, %c0_i32_2 : i32, i32, i32, i32
  }
  func.func @transform_2(%arg0: i32, %arg1: i32) -> (i32, i32) {
    %c0_i32 = arith.constant 0 : i32
    %c0_i32_0 = arith.constant 0 : i32
    %c0_i32_1 = arith.constant 0 : i32
    return %c0_i32, %c0_i32_0 : i32, i32
  }
  func.func @transform_3(%arg0: i32, %arg1: i32) -> (i32, i32, i32) {
    %c0_i32 = arith.constant 0 : i32
    %c0_i32_0 = arith.constant 0 : i32
    return %arg0, %arg1, %c0_i32 : i32, i32, i32
  }
}

</mosaic_0001>

<llo_original>
// kernel: tpu_custom_call.1
$region0: #{tpu_custom_call.1}
  #allocation0 [shape = 'u32[]', space=smem, size = 0x4, offset = 0x4, fixed_abs, tag = 'smem constant byte address 0x4 - core index']
  #allocation1 [shape = 'u32[72,128]{1,0:T(1,128)}', space=vmem, size = 0x9000, scoped, tag = 'internal scratch']
  %s0 = inlined_call_operand.vmem [shape: f32[2,110,3], index: 0, kind: input, shape index: {}]
  %s1 = inlined_call_operand.vmem [shape: bf16[3,3,3,8], index: 1, kind: input, shape index: {}]
  %s2 = inlined_call_operand.vmem [shape: f32[1,8], index: 2, kind: input, shape index: {}]
  %s3 = inlined_call_operand.vmem [shape: f32[2,80,8], index: 3, kind: output, shape index: {}]
  %s4 = sld [smem:[#allocation0]]
  $region45: #{tpu_custom_call.1} parent=0
    _
  %s6 = ssub.s32 1, %s4
  %s7 = scalar_select 0, %s6, %s4
  loop: start=0, step=1, limit=4
  $region2: #{tpu_custom_call.1} parent=0 // loop_pre_header
    _
  $region3: #{tpu_custom_call.1} parent=0 // loop_header
    %s9 = sphi 0, %s13
    %p10 = scmp.ge.s32.totalorder %s9, 4
    %s16 = sphi 0, %s28
    %s17 = sphi 0, %s24
    %s18 = sphi 0, %s16
    %s19 = sphi 0, %s17
    %s20 = sphi 0, %s18
    %s21 = sphi 0, %s19
    %s31 = sphi 0, %s33
    %s34 = sphi 0, %s31
    %s35 = sphi 0, %s34
    %s51 = sphi 0, %s35
    %s55 = sphi 0, %s55
    %s57 = sphi 0, %s55
    %s58 = sphi 0, %s57
    %s72 = sphi 0, %s58
    %s76 = sphi 0, %s76
    %s78 = sphi 0, %s76
    %s79 = sphi 0, %s78
    %s93 = sphi 0, %s79
    %s101 = sphi 0, %s103
    %s104 = sphi 0, %s101
    %s105 = sphi 0, %s104
    %s121 = sphi 0, %s105
  $region4: #{tpu_custom_call.1} parent=0 // loop_header_branch
    %12 = sbr.rel (%p10) target = $region8
  $region5: #{tpu_custom_call.1} parent=0 // loop_body
    %s14 = ssub.s32 %s9, 1
    %s15 = ssub.s32 %s9, 2
    %s22 = sadd.s32 1, %s17
    %p23 = scmp.ge.s32.totalorder %s22, 1
    %s24 = scalar_select %p23, 0, %s22
    %s25 = sadd.s32 1, %s16
    %s26 = scalar_select %p23, %s25, %s16
    %p27 = scmp.ge.s32.totalorder %s26, 2
    %s28 = scalar_select %p27, 0, %s26
    %s29 = ssub.s32 %s16, %s28
    %p30 = scmp.eq.s32.totalorder %s29, 0
    %s32 = sadd.s32 %s31, 1
    %s33 = scalar_select %p30, %s31, %s32
    %p36 = pneg %p30
    %p37 = scmp.eq.s32.totalorder %s9, 1
    %p38 = por %p36, %p37
    %p39 = scmp.ne.s32.totalorder %s31, %s34
    %p40 = scmp.eq.s32.totalorder %s9, 0
    %p41 = por %p39, %p40
    %p42 = scmp.ne.s32.totalorder %s31, %s34
    %p43 = scmp.eq.s32.totalorder %s14, 1
    %p44 = por %p42, %p43
    %p45 = scmp.ne.s32.totalorder %s34, %s35
    %p46 = scmp.eq.s32.totalorder %s14, 0
    %p47 = por %p45, %p46
    %p48 = scmp.ne.s32.totalorder %s34, %s35
    %p49 = scmp.eq.s32.totalorder %s15, 1
    %p50 = por %p48, %p49
    %p52 = scmp.ne.s32.totalorder %s35, %s51
    %p53 = scmp.eq.s32.totalorder %s15, 0
    %p54 = por %p52, %p53
    %s56 = sadd.s32 %s55, 1
    %p59 = scmp.eq.s32.totalorder %s9, 1
    %p60 = scmp.ne.s32.totalorder %s55, %s57
    %p61 = scmp.eq.s32.totalorder %s9, 0
    %p62 = por %p60, %p61
    %p63 = scmp.ne.s32.totalorder %s55, %s57
    %p64 = scmp.eq.s32.totalorder %s14, 1
    %p65 = por %p63, %p64
    %p66 = scmp.ne.s32.totalorder %s57, %s58
    %p67 = scmp.eq.s32.totalorder %s14, 0
    %p68 = por %p66, %p67
    %p69 = scmp.ne.s32.totalorder %s57, %s58
    %p70 = scmp.eq.s32.totalorder %s15, 1
    %p71 = por %p69, %p70
    %p73 = scmp.ne.s32.totalorder %s58, %s72
    %p74 = scmp.eq.s32.totalorder %s15, 0
    %p75 = por %p73, %p74
    %s77 = sadd.s32 %s76, 1
    %p80 = scmp.eq.s32.totalorder %s9, 1
    %p81 = scmp.ne.s32.totalorder %s76, %s78
    %p82 = scmp.eq.s32.totalorder %s9, 0
    %p83 = por %p81, %p82
    %p84 = scmp.ne.s32.totalorder %s76, %s78
    %p85 = scmp.eq.s32.totalorder %s14, 1
    %p86 = por %p84, %p85
    %p87 = scmp.ne.s32.totalorder %s78, %s79
    %p88 = scmp.eq.s32.totalorder %s14, 0
    %p89 = por %p87, %p88
    %p90 = scmp.ne.s32.totalorder %s78, %s79
    %p91 = scmp.eq.s32.totalorder %s15, 1
    %p92 = por %p90, %p91
    %p94 = scmp.ne.s32.totalorder %s79, %s93
    %p95 = scmp.eq.s32.totalorder %s15, 0
    %p96 = por %p94, %p95
    %s97 = ssub.s32 %s16, %s28
    %s98 = ssub.s32 %s17, %s24
    %s99 = sor.u32 %s97, %s98
    %p100 = scmp.eq.s32.totalorder %s99, 0
    %s102 = sadd.s32 %s101, 1
    %s103 = scalar_select %p100, %s101, %s102
    %p106 = pneg %p100
    %p107 = scmp.eq.s32.totalorder %s9, 1
    %p108 = por %p106, %p107
    %p109 = scmp.ne.s32.totalorder %s101, %s104
    %p110 = scmp.eq.s32.totalorder %s9, 0
    %p111 = por %p109, %p110
    %p112 = scmp.ne.s32.totalorder %s101, %s104
    %p113 = scmp.eq.s32.totalorder %s14, 1
    %p114 = por %p112, %p113
    %p115 = scmp.ne.s32.totalorder %s104, %s105
    %p116 = scmp.eq.s32.totalorder %s14, 0
    %p117 = por %p115, %p116
    %p118 = scmp.ne.s32.totalorder %s104, %s105
    %p119 = scmp.eq.s32.totalorder %s15, 1
    %p120 = por %p118, %p119
    %p122 = scmp.ne.s32.totalorder %s105, %s121
    %p123 = scmp.eq.s32.totalorder %s15, 0
    %p124 = por %p122, %p123
    %p125 = scmp.le.s32.totalorder 1, %s9
    %p126 = scmp.lt.s32.totalorder %s9, 3
    %p127 = pnand %p125, %p126
    %p128 = pneg %p127
    // Predicated region
    $region9: #{tpu_custom_call.1} parent=5 // pred_check
      _
    $region10: #{tpu_custom_call.1} parent=5 // pred_check_branch
      %130 = sbr.rel (%p127) target = $region12
    $region11: #{tpu_custom_call.1} parent=5 // pred_region
      %s131 = ssub.s32 %s9, 1
      // Predicated region
      $region13: #{tpu_custom_call.1} parent=11 // pred_check
        %p132 = pneg %p68
      $region14: #{tpu_custom_call.1} parent=11 // pred_check_branch
        %134 = sbr.rel (%p132) target = $region16
      $region15: #{tpu_custom_call.1} parent=11 // pred_region
        _
      $region16: #{tpu_custom_call.1} parent=11 // pred_fallthru
        _
      // Predicated region
      $region17: #{tpu_custom_call.1} parent=11 // pred_check
        %p135 = pneg %p89
      $region18: #{tpu_custom_call.1} parent=11 // pred_check_branch
        %137 = sbr.rel (%p135) target = $region20
      $region19: #{tpu_custom_call.1} parent=11 // pred_region
        _
      $region20: #{tpu_custom_call.1} parent=11 // pred_fallthru
        _
    $region12: #{tpu_custom_call.1} parent=5 // pred_fallthru
      _
    %p138 = scmp.lt.s32.totalorder %s9, 2
    // Predicated region
    $region21: #{tpu_custom_call.1} parent=5 // pred_check
      %p139 = pneg %p138
    $region22: #{tpu_custom_call.1} parent=5 // pred_check_branch
      %141 = sbr.rel (%p139) target = $region24
    $region23: #{tpu_custom_call.1} parent=5 // pred_region
      // Predicated region
      $region25: #{tpu_custom_call.1} parent=23 // pred_check
        %p142 = pneg %p41
      $region26: #{tpu_custom_call.1} parent=23 // pred_check_branch
        %144 = sbr.rel (%p142) target = $region28
      $region27: #{tpu_custom_call.1} parent=23 // pred_region
        %p145 = scmp.lt.s32.totalorder %s16, 1
        %s146 = scalar_select %p145, %s16, 1
        %s147 = smul.addr %s146, 14
        %s148 = smul.addr %s147, 8
        %s149 = scalar_lea.vmem %s0, %s148
      $region28: #{tpu_custom_call.1} parent=23 // pred_fallthru
        _
    $region24: #{tpu_custom_call.1} parent=5 // pred_fallthru
      _
    %p150 = scmp.le.s32.totalorder 1, %s9
    %p151 = scmp.lt.s32.totalorder %s9, 3
    %p152 = pnand %p150, %p151
    %p153 = pneg %p152
    // Predicated region
    $region29: #{tpu_custom_call.1} parent=5 // pred_check
      _
    $region30: #{tpu_custom_call.1} parent=5 // pred_check_branch
      %155 = sbr.rel (%p152) target = $region32
    $region31: #{tpu_custom_call.1} parent=5 // pred_region
      %s156 = ssub.s32 %s9, 1
      %p157 = scmp.lt.s32.totalorder %s18, 1
      %s158 = scalar_select %p157, %s18, 1
      %s159 = smul.addr %s158, 14
      %s160 = smul.addr %s159, 8
      %s161 = scalar_lea.vmem %s0, %s160
      %p162 = pneg %p47
      %p163 = pneg %p44
      %p164 = pneg %p68
      %p165 = pneg %p65
      %p166 = pneg %p89
      %p167 = pneg %p86
      %p168 = pneg %p117
      %p169 = pneg %p114
      %s170 = smul.u32 10, %s19
      %p171 = scmp.lt.s32.totalorder %s18, 1
      %s172 = scalar_select %p171, %s18, 1
      %p173 = scmp.lt.s32.totalorder %s170, 9
      %s174 = scalar_select %p173, %s170, 9
      %s175 = smul.addr %s172, 10
      %s176 = sadd.s32 %s174, %s175
      %s177 = smul.addr %s176, 8
      %s178 = scalar_lea.vmem %s3, %s177
      %p179 = scmp.lt.s32.totalorder %s18, 1
      %s180 = scalar_select %p179, %s18, 1
      %s181 = smul.addr %s180, 14
      %s182 = smul.addr %s181, 8
      %s183 = scalar_lea.vmem %s0, %s182
      %s184 = smul.u32 10, %s19
      %p185 = scmp.lt.s32.totalorder %s18, 1
      %s186 = scalar_select %p185, %s18, 1
      %p187 = scmp.lt.s32.totalorder %s184, 9
      %s188 = scalar_select %p187, %s184, 9
      %s189 = smul.addr %s186, 10
      %s190 = sadd.s32 %s188, %s189
      %s191 = smul.addr %s190, 8
      %s192 = scalar_lea.vmem %s3, %s191
      %s193 = smul.u32 10, %s19
      %s195 = smul.u32 %s19, 80
      %s196 = scalar_lea.vmem %s183, %s195
      %v197 = vld [vmem:[%s196] sm:$0xff]
      %v198 = vld [vmem:[%s196 + $0x8] sm:$0xff]
      %v199 = vld [vmem:[%s196 + $0x10] sm:$0xff]
      %v200 = vld [vmem:[%s196 + $0x18] sm:$0xff]
      %v201 = vld [vmem:[%s196 + $0x20] sm:$0xff]
      %v202 = vld [vmem:[%s196 + $0x28] sm:$0xff]
      %v203 = vld [vmem:[%s196 + $0x30] sm:$0xff]
      %v204 = vld [vmem:[%s196 + $0x38] sm:$0xff]
      %v205 = vld [vmem:[%s196 + $0x40] sm:$0xff]
      %v206 = vld [vmem:[%s196 + $0x48] sm:$0xff]
      %v207 = vpack.c.bf16 %v198, %v197
      %v208 = vpack.c.bf16 %v200, %v199
      %v209 = vpack.c.bf16 %v202, %v201
      %v210 = vpack.c.bf16 %v204, %v203
      %v211 = vpack.c.bf16 %v206, %v205
      %v212 = vld [vmem:[%s1] sm:$0x3]
      %s213 = sadd.s32 %s195, 1
      %s214 = scalar_lea.vmem %s183, %s213
      %v215 = vld [vmem:[%s214] sm:$0xff]
      %v216 = vld [vmem:[%s214 + $0x8] sm:$0xff]
      %v217 = vld [vmem:[%s214 + $0x10] sm:$0xff]
      %v218 = vld [vmem:[%s214 + $0x18] sm:$0xff]
      %v219 = vld [vmem:[%s214 + $0x20] sm:$0xff]
      %v220 = vld [vmem:[%s214 + $0x28] sm:$0xff]
      %v221 = vld [vmem:[%s214 + $0x30] sm:$0xff]
      %v222 = vld [vmem:[%s214 + $0x38] sm:$0xff]
      %v223 = vld [vmem:[%s214 + $0x40] sm:$0xff]
      %v224 = vld [vmem:[%s214 + $0x48] sm:$0xff]
      %v225 = vpack.c.bf16 %v216, %v215
      %v226 = vpack.c.bf16 %v218, %v217
      %v227 = vpack.c.bf16 %v220, %v219
      %v228 = vpack.c.bf16 %v222, %v221
      %v229 = vpack.c.bf16 %v224, %v223
      %s230 = scalar_lea.vmem %s1, 2
      %v231 = vld [vmem:[%s230] sm:$0x3]
      %vm232 = vcmask 23552
      %v234 = vsel %vm232, %v225, 0
      %v237 = vsel %vm232, %v226, 0
      %v240 = vsel %vm232, %v227, 0
      %v243 = vsel %vm232, %v228, 0
      %v246 = vsel %vm232, %v229, 0
      %vm248 = vcmask 1040384
      %vm249 = vcmask 1041408
      %v250 = vsel %vm248, 4294967295, 65535
      %v251 = vsel %vm249, %v250, 0
      %v253 = vand.u32 %v231, %v251
      %255 = vmatpush.bf16.msra.mxu0 0
      %256 = vmatpush.bf16.msra.mxu0 0
      %257 = vmatpush.bf16.msra.mxu0 0
      %258 = vmatpush.bf16.msra.mxu0 0
      %259 = vmatpush.bf16.msra.mxu0 0
      %260 = vmatpush.bf16.msra.mxu0 0
      %261 = vmatpush.bf16.msra.mxu0 0
      %262 = vmatpush.bf16.msra.mxu0 %v253
      %263 = vmatmul.bf16.gmra.mxu0 %v234
      %v264 = vpop.f32.mrf.mxu0
      %v265 = vadd.f32 0.0, %v264
      %v266 = vpop.f32.mrf.mxu0
      %v267 = vadd.f32 0.0, %v266
      %268 = vmatmul.bf16.gmra.mxu0 %v237
      %v269 = vpop.f32.mrf.mxu0
      %v270 = vadd.f32 0.0, %v269
      %v271 = vpop.f32.mrf.mxu0
      %v272 = vadd.f32 0.0, %v271
      %273 = vmatmul.bf16.gmra.mxu0 %v240
      %v274 = vpop.f32.mrf.mxu0
      %v275 = vadd.f32 0.0, %v274
      %v276 = vpop.f32.mrf.mxu0
      %v277 = vadd.f32 0.0, %v276
      %278 = vmatmul.bf16.gmra.mxu0 %v243
      %v279 = vpop.f32.mrf.mxu0
      %v280 = vadd.f32 0.0, %v279
      %v281 = vpop.f32.mrf.mxu0
      %v282 = vadd.f32 0.0, %v281
      %283 = vmatmul.bf16.gmra.mxu0 %v246
      %v284 = vpop.f32.mrf.mxu0
      %v285 = vadd.f32 0.0, %v284
      %v286 = vpop.f32.mrf.mxu0
      %v287 = vadd.f32 0.0, %v286
      %288 = vdwg.mxu0
      %v290 = vsel %vm232, %v207, 0
      %v293 = vsel %vm232, %v208, 0
      %v296 = vsel %vm232, %v209, 0
      %v299 = vsel %vm232, %v210, 0
      %v302 = vsel %vm232, %v211, 0
      %v305 = vand.u32 %v212, %v251
      %307 = vmatpush.bf16.msra.mxu0 0
      %308 = vmatpush.bf16.msra.mxu0 0
      %309 = vmatpush.bf16.msra.mxu0 0
      %310 = vmatpush.bf16.msra.mxu0 0
      %311 = vmatpush.bf16.msra.mxu0 0
      %312 = vmatpush.bf16.msra.mxu0 0
      %313 = vmatpush.bf16.msra.mxu0 0
      %314 = vmatpush.bf16.msra.mxu0 %v305
      %315 = vmatmul.bf16.gmra.mxu0 %v290
      %v316 = vpop.f32.mrf.mxu0
      %v317 = vadd.f32 %v265, %v316
      %v318 = vpop.f32.mrf.mxu0
      %v319 = vadd.f32 %v267, %v318
      %320 = vmatmul.bf16.gmra.mxu0 %v293
      %v321 = vpop.f32.mrf.mxu0
      %v322 = vadd.f32 %v270, %v321
      %v323 = vpop.f32.mrf.mxu0
      %v324 = vadd.f32 %v272, %v323
      %325 = vmatmul.bf16.gmra.mxu0 %v296
      %v326 = vpop.f32.mrf.mxu0
      %v327 = vadd.f32 %v275, %v326
      %v328 = vpop.f32.mrf.mxu0
      %v329 = vadd.f32 %v277, %v328
      %330 = vmatmul.bf16.gmra.mxu0 %v299
      %v331 = vpop.f32.mrf.mxu0
      %v332 = vadd.f32 %v280, %v331
      %v333 = vpop.f32.mrf.mxu0
      %v334 = vadd.f32 %v282, %v333
      %335 = vmatmul.bf16.gmra.mxu0 %v302
      %v336 = vpop.f32.mrf.mxu0
      %v337 = vadd.f32 %v285, %v336
      %v338 = vpop.f32.mrf.mxu0
      %v339 = vadd.f32 %v287, %v338
      %340 = vdwg.mxu0
      %s341 = sadd.s32 %s195, 2
      %s342 = scalar_lea.vmem %s183, %s341
      %v343 = vld [vmem:[%s342] sm:$0xff]
      %v344 = vld [vmem:[%s342 + $0x8] sm:$0xff]
      %v345 = vld [vmem:[%s342 + $0x10] sm:$0xff]
      %v346 = vld [vmem:[%s342 + $0x18] sm:$0xff]
      %v347 = vld [vmem:[%s342 + $0x20] sm:$0xff]
      %v348 = vld [vmem:[%s342 + $0x28] sm:$0xff]
      %v349 = vld [vmem:[%s342 + $0x30] sm:$0xff]
      %v350 = vld [vmem:[%s342 + $0x38] sm:$0xff]
      %v351 = vld [vmem:[%s342 + $0x40] sm:$0xff]
      %v352 = vld [vmem:[%s342 + $0x48] sm:$0xff]
      %v353 = vpack.c.bf16 %v344, %v343
      %v354 = vpack.c.bf16 %v346, %v345
      %v355 = vpack.c.bf16 %v348, %v347
      %v356 = vpack.c.bf16 %v350, %v349
      %v357 = vpack.c.bf16 %v352, %v351
      %s358 = scalar_lea.vmem %s1, 4
      %v359 = vld [vmem:[%s358] sm:$0x3]
      %v361 = vsel %vm232, %v353, 0
      %v364 = vsel %vm232, %v354, 0
      %v367 = vsel %vm232, %v355, 0
      %v370 = vsel %vm232, %v356, 0
      %v373 = vsel %vm232, %v357, 0
      %v376 = vand.u32 %v359, %v251
      %378 = vmatpush.bf16.msra.mxu0 0
      %379 = vmatpush.bf16.msra.mxu0 0
      %380 = vmatpush.bf16.msra.mxu0 0
      %381 = vmatpush.bf16.msra.mxu0 0
      %382 = vmatpush.bf16.msra.mxu0 0
      %383 = vmatpush.bf16.msra.mxu0 0
      %384 = vmatpush.bf16.msra.mxu0 0
      %385 = vmatpush.bf16.msra.mxu0 %v376
      %386 = vmatmul.bf16.gmra.mxu0 %v361
      %v387 = vpop.f32.mrf.mxu0
      %v388 = vadd.f32 0.0, %v387
      %v389 = vpop.f32.mrf.mxu0
      %v390 = vadd.f32 0.0, %v389
      %391 = vmatmul.bf16.gmra.mxu0 %v364
      %v392 = vpop.f32.mrf.mxu0
      %v393 = vadd.f32 0.0, %v392
      %v394 = vpop.f32.mrf.mxu0
      %v395 = vadd.f32 0.0, %v394
      %396 = vmatmul.bf16.gmra.mxu0 %v367
      %v397 = vpop.f32.mrf.mxu0
      %v398 = vadd.f32 0.0, %v397
      %v399 = vpop.f32.mrf.mxu0
      %v400 = vadd.f32 0.0, %v399
      %401 = vmatmul.bf16.gmra.mxu0 %v370
      %v402 = vpop.f32.mrf.mxu0
      %v403 = vadd.f32 0.0, %v402
      %v404 = vpop.f32.mrf.mxu0
      %v405 = vadd.f32 0.0, %v404
      %406 = vmatmul.bf16.gmra.mxu0 %v373
      %v407 = vpop.f32.mrf.mxu0
      %v408 = vadd.f32 0.0, %v407
      %v409 = vpop.f32.mrf.mxu0
      %v410 = vadd.f32 0.0, %v409
      %411 = vdwg.mxu0
      %v412 = vadd.f32 %v317, %v388
      %v413 = vadd.f32 %v319, %v390
      %v414 = vadd.f32 %v322, %v393
      %v415 = vadd.f32 %v324, %v395
      %v416 = vadd.f32 %v327, %v398
      %v417 = vadd.f32 %v329, %v400
      %v418 = vadd.f32 %v332, %v403
      %v419 = vadd.f32 %v334, %v405
      %v420 = vadd.f32 %v337, %v408
      %v421 = vadd.f32 %v339, %v410
      %s422 = sadd.s32 %s195, 10
      %s423 = scalar_lea.vmem %s183, %s422
      %v424 = vld [vmem:[%s423] sm:$0xff]
      %v425 = vld [vmem:[%s423 + $0x8] sm:$0xff]
      %v426 = vld [vmem:[%s423 + $0x10] sm:$0xff]
      %v427 = vld [vmem:[%s423 + $0x18] sm:$0xff]
      %v428 = vld [vmem:[%s423 + $0x20] sm:$0xff]
      %v429 = vld [vmem:[%s423 + $0x28] sm:$0xff]
      %v430 = vld [vmem:[%s423 + $0x30] sm:$0xff]
      %v431 = vld [vmem:[%s423 + $0x38] sm:$0xff]
      %v432 = vld [vmem:[%s423 + $0x40] sm:$0xff]
      %v433 = vld [vmem:[%s423 + $0x48] sm:$0xff]
      %v434 = vpack.c.bf16 %v425, %v424
      %v435 = vpack.c.bf16 %v427, %v426
      %v436 = vpack.c.bf16 %v429, %v428
      %v437 = vpack.c.bf16 %v431, %v430
      %v438 = vpack.c.bf16 %v433, %v432
      %s439 = scalar_lea.vmem %s1, 6
      %v440 = vld [vmem:[%s439] sm:$0x3]
      %v442 = vsel %vm232, %v434, 0
      %v445 = vsel %vm232, %v435, 0
      %v448 = vsel %vm232, %v436, 0
      %v451 = vsel %vm232, %v437, 0
      %v454 = vsel %vm232, %v438, 0
      %v457 = vand.u32 %v440, %v251
      %459 = vmatpush.bf16.msra.mxu0 0
      %460 = vmatpush.bf16.msra.mxu0 0
      %461 = vmatpush.bf16.msra.mxu0 0
      %462 = vmatpush.bf16.msra.mxu0 0
      %463 = vmatpush.bf16.msra.mxu0 0
      %464 = vmatpush.bf16.msra.mxu0 0
      %465 = vmatpush.bf16.msra.mxu0 0
      %466 = vmatpush.bf16.msra.mxu0 %v457
      %467 = vmatmul.bf16.gmra.mxu0 %v442
      %v468 = vpop.f32.mrf.mxu0
      %v469 = vadd.f32 0.0, %v468
      %v470 = vpop.f32.mrf.mxu0
      %v471 = vadd.f32 0.0, %v470
      %472 = vmatmul.bf16.gmra.mxu0 %v445
      %v473 = vpop.f32.mrf.mxu0
      %v474 = vadd.f32 0.0, %v473
      %v475 = vpop.f32.mrf.mxu0
      %v476 = vadd.f32 0.0, %v475
      %477 = vmatmul.bf16.gmra.mxu0 %v448
      %v478 = vpop.f32.mrf.mxu0
      %v479 = vadd.f32 0.0, %v478
      %v480 = vpop.f32.mrf.mxu0
      %v481 = vadd.f32 0.0, %v480
      %482 = vmatmul.bf16.gmra.mxu0 %v451
      %v483 = vpop.f32.mrf.mxu0
      %v484 = vadd.f32 0.0, %v483
      %v485 = vpop.f32.mrf.mxu0
      %v486 = vadd.f32 0.0, %v485
      %487 = vmatmul.bf16.gmra.mxu0 %v454
      %v488 = vpop.f32.mrf.mxu0
      %v489 = vadd.f32 0.0, %v488
      %v490 = vpop.f32.mrf.mxu0
      %v491 = vadd.f32 0.0, %v490
      %492 = vdwg.mxu0
      %v493 = vadd.f32 %v412, %v469
      %v494 = vadd.f32 %v413, %v471
      %v495 = vadd.f32 %v414, %v474
      %v496 = vadd.f32 %v415, %v476
      %v497 = vadd.f32 %v416, %v479
      %v498 = vadd.f32 %v417, %v481
      %v499 = vadd.f32 %v418, %v484
      %v500 = vadd.f32 %v419, %v486
      %v501 = vadd.f32 %v420, %v489
      %v502 = vadd.f32 %v421, %v491
      %s503 = sadd.s32 %s195, 11
      %s504 = scalar_lea.vmem %s183, %s503
      %v505 = vld [vmem:[%s504] sm:$0xff]
      %v506 = vld [vmem:[%s504 + $0x8] sm:$0xff]
      %v507 = vld [vmem:[%s504 + $0x10] sm:$0xff]
      %v508 = vld [vmem:[%s504 + $0x18] sm:$0xff]
      %v509 = vld [vmem:[%s504 + $0x20] sm:$0xff]
      %v510 = vld [vmem:[%s504 + $0x28] sm:$0xff]
      %v511 = vld [vmem:[%s504 + $0x30] sm:$0xff]
      %v512 = vld [vmem:[%s504 + $0x38] sm:$0xff]
      %v513 = vld [vmem:[%s504 + $0x40] sm:$0xff]
      %v514 = vld [vmem:[%s504 + $0x48] sm:$0xff]
      %v515 = vpack.c.bf16 %v506, %v505
      %v516 = vpack.c.bf16 %v508, %v507
      %v517 = vpack.c.bf16 %v510, %v509
      %v518 = vpack.c.bf16 %v512, %v511
      %v519 = vpack.c.bf16 %v514, %v513
      %s520 = scalar_lea.vmem %s1, 8
      %v521 = vld [vmem:[%s520] sm:$0x3]
      %v523 = vsel %vm232, %v515, 0
      %v526 = vsel %vm232, %v516, 0
      %v529 = vsel %vm232, %v517, 0
      %v532 = vsel %vm232, %v518, 0
      %v535 = vsel %vm232, %v519, 0
      %v538 = vand.u32 %v521, %v251
      %540 = vmatpush.bf16.msra.mxu0 0
      %541 = vmatpush.bf16.msra.mxu0 0
      %542 = vmatpush.bf16.msra.mxu0 0
      %543 = vmatpush.bf16.msra.mxu0 0
      %544 = vmatpush.bf16.msra.mxu0 0
      %545 = vmatpush.bf16.msra.mxu0 0
      %546 = vmatpush.bf16.msra.mxu0 0
      %547 = vmatpush.bf16.msra.mxu0 %v538
      %548 = vmatmul.bf16.gmra.mxu0 %v523
      %v549 = vpop.f32.mrf.mxu0
      %v550 = vadd.f32 0.0, %v549
      %v551 = vpop.f32.mrf.mxu0
      %v552 = vadd.f32 0.0, %v551
      %553 = vmatmul.bf16.gmra.mxu0 %v526
      %v554 = vpop.f32.mrf.mxu0
      %v555 = vadd.f32 0.0, %v554
      %v556 = vpop.f32.mrf.mxu0
      %v557 = vadd.f32 0.0, %v556
      %558 = vmatmul.bf16.gmra.mxu0 %v529
      %v559 = vpop.f32.mrf.mxu0
      %v560 = vadd.f32 0.0, %v559
      %v561 = vpop.f32.mrf.mxu0
      %v562 = vadd.f32 0.0, %v561
      %563 = vmatmul.bf16.gmra.mxu0 %v532
      %v564 = vpop.f32.mrf.mxu0
      %v565 = vadd.f32 0.0, %v564
      %v566 = vpop.f32.mrf.mxu0
      %v567 = vadd.f32 0.0, %v566
      %568 = vmatmul.bf16.gmra.mxu0 %v535
      %v569 = vpop.f32.mrf.mxu0
      %v570 = vadd.f32 0.0, %v569
      %v571 = vpop.f32.mrf.mxu0
      %v572 = vadd.f32 0.0, %v571
      %573 = vdwg.mxu0
      %v574 = vadd.f32 %v493, %v550
      %v575 = vadd.f32 %v494, %v552
      %v576 = vadd.f32 %v495, %v555
      %v577 = vadd.f32 %v496, %v557
      %v578 = vadd.f32 %v497, %v560
      %v579 = vadd.f32 %v498, %v562
      %v580 = vadd.f32 %v499, %v565
      %v581 = vadd.f32 %v500, %v567
      %v582 = vadd.f32 %v501, %v570
      %v583 = vadd.f32 %v502, %v572
      %s584 = sadd.s32 %s195, 12
      %s585 = scalar_lea.vmem %s183, %s584
      %v586 = vld [vmem:[%s585] sm:$0xff]
      %v587 = vld [vmem:[%s585 + $0x8] sm:$0xff]
      %v588 = vld [vmem:[%s585 + $0x10] sm:$0xff]
      %v589 = vld [vmem:[%s585 + $0x18] sm:$0xff]
      %v590 = vld [vmem:[%s585 + $0x20] sm:$0xff]
      %v591 = vld [vmem:[%s585 + $0x28] sm:$0xff]
      %v592 = vld [vmem:[%s585 + $0x30] sm:$0xff]
      %v593 = vld [vmem:[%s585 + $0x38] sm:$0xff]
      %v594 = vld [vmem:[%s585 + $0x40] sm:$0xff]
      %v595 = vld [vmem:[%s585 + $0x48] sm:$0xff]
      %v596 = vpack.c.bf16 %v587, %v586
      %v597 = vpack.c.bf16 %v589, %v588
      %v598 = vpack.c.bf16 %v591, %v590
      %v599 = vpack.c.bf16 %v593, %v592
      %v600 = vpack.c.bf16 %v595, %v594
      %s601 = scalar_lea.vmem %s1, 10
      %v602 = vld [vmem:[%s601] sm:$0x3]
      %v604 = vsel %vm232, %v596, 0
      %v607 = vsel %vm232, %v597, 0
      %v610 = vsel %vm232, %v598, 0
      %v613 = vsel %vm232, %v599, 0
      %v616 = vsel %vm232, %v600, 0
      %v619 = vand.u32 %v602, %v251
      %621 = vmatpush.bf16.msra.mxu0 0
      %622 = vmatpush.bf16.msra.mxu0 0
      %623 = vmatpush.bf16.msra.mxu0 0
      %624 = vmatpush.bf16.msra.mxu0 0
      %625 = vmatpush.bf16.msra.mxu0 0
      %626 = vmatpush.bf16.msra.mxu0 0
      %627 = vmatpush.bf16.msra.mxu0 0
      %628 = vmatpush.bf16.msra.mxu0 %v619
      %629 = vmatmul.bf16.gmra.mxu0 %v604
      %v630 = vpop.f32.mrf.mxu0
      %v631 = vadd.f32 0.0, %v630
      %v632 = vpop.f32.mrf.mxu0
      %v633 = vadd.f32 0.0, %v632
      %634 = vmatmul.bf16.gmra.mxu0 %v607
      %v635 = vpop.f32.mrf.mxu0
      %v636 = vadd.f32 0.0, %v635
      %v637 = vpop.f32.mrf.mxu0
      %v638 = vadd.f32 0.0, %v637
      %639 = vmatmul.bf16.gmra.mxu0 %v610
      %v640 = vpop.f32.mrf.mxu0
      %v641 = vadd.f32 0.0, %v640
      %v642 = vpop.f32.mrf.mxu0
      %v643 = vadd.f32 0.0, %v642
      %644 = vmatmul.bf16.gmra.mxu0 %v613
      %v645 = vpop.f32.mrf.mxu0
      %v646 = vadd.f32 0.0, %v645
      %v647 = vpop.f32.mrf.mxu0
      %v648 = vadd.f32 0.0, %v647
      %649 = vmatmul.bf16.gmra.mxu0 %v616
      %v650 = vpop.f32.mrf.mxu0
      %v651 = vadd.f32 0.0, %v650
      %v652 = vpop.f32.mrf.mxu0
      %v653 = vadd.f32 0.0, %v652
      %654 = vdwg.mxu0
      %v655 = vadd.f32 %v574, %v631
      %v656 = vadd.f32 %v575, %v633
      %v657 = vadd.f32 %v576, %v636
      %v658 = vadd.f32 %v577, %v638
      %v659 = vadd.f32 %v578, %v641
      %v660 = vadd.f32 %v579, %v643
      %v661 = vadd.f32 %v580, %v646
      %v662 = vadd.f32 %v581, %v648
      %v663 = vadd.f32 %v582, %v651
      %v664 = vadd.f32 %v583, %v653
      %s665 = sadd.s32 %s195, 20
      %s666 = scalar_lea.vmem %s183, %s665
      %v667 = vld [vmem:[%s666] sm:$0xff]
      %v668 = vld [vmem:[%s666 + $0x8] sm:$0xff]
      %v669 = vld [vmem:[%s666 + $0x10] sm:$0xff]
      %v670 = vld [vmem:[%s666 + $0x18] sm:$0xff]
      %v671 = vld [vmem:[%s666 + $0x20] sm:$0xff]
      %v672 = vld [vmem:[%s666 + $0x28] sm:$0xff]
      %v673 = vld [vmem:[%s666 + $0x30] sm:$0xff]
      %v674 = vld [vmem:[%s666 + $0x38] sm:$0xff]
      %v675 = vld [vmem:[%s666 + $0x40] sm:$0xff]
      %v676 = vld [vmem:[%s666 + $0x48] sm:$0xff]
      %v677 = vpack.c.bf16 %v668, %v667
      %v678 = vpack.c.bf16 %v670, %v669
      %v679 = vpack.c.bf16 %v672, %v671
      %v680 = vpack.c.bf16 %v674, %v673
      %v681 = vpack.c.bf16 %v676, %v675
      %s682 = scalar_lea.vmem %s1, 12
      %v683 = vld [vmem:[%s682] sm:$0x3]
      %v685 = vsel %vm232, %v677, 0
      %v688 = vsel %vm232, %v678, 0
      %v691 = vsel %vm232, %v679, 0
      %v694 = vsel %vm232, %v680, 0
      %v697 = vsel %vm232, %v681, 0
      %v700 = vand.u32 %v683, %v251
      %702 = vmatpush.bf16.msra.mxu0 0
      %703 = vmatpush.bf16.msra.mxu0 0
      %704 = vmatpush.bf16.msra.mxu0 0
      %705 = vmatpush.bf16.msra.mxu0 0
      %706 = vmatpush.bf16.msra.mxu0 0
      %707 = vmatpush.bf16.msra.mxu0 0
      %708 = vmatpush.bf16.msra.mxu0 0
      %709 = vmatpush.bf16.msra.mxu0 %v700
      %710 = vmatmul.bf16.gmra.mxu0 %v685
      %v711 = vpop.f32.mrf.mxu0
      %v712 = vadd.f32 0.0, %v711
      %v713 = vpop.f32.mrf.mxu0
      %v714 = vadd.f32 0.0, %v713
      %715 = vmatmul.bf16.gmra.mxu0 %v688
      %v716 = vpop.f32.mrf.mxu0
      %v717 = vadd.f32 0.0, %v716
      %v718 = vpop.f32.mrf.mxu0
      %v719 = vadd.f32 0.0, %v718
      %720 = vmatmul.bf16.gmra.mxu0 %v691
      %v721 = vpop.f32.mrf.mxu0
      %v722 = vadd.f32 0.0, %v721
      %v723 = vpop.f32.mrf.mxu0
      %v724 = vadd.f32 0.0, %v723
      %725 = vmatmul.bf16.gmra.mxu0 %v694
      %v726 = vpop.f32.mrf.mxu0
      %v727 = vadd.f32 0.0, %v726
      %v728 = vpop.f32.mrf.mxu0
      %v729 = vadd.f32 0.0, %v728
      %730 = vmatmul.bf16.gmra.mxu0 %v697
      %v731 = vpop.f32.mrf.mxu0
      %v732 = vadd.f32 0.0, %v731
      %v733 = vpop.f32.mrf.mxu0
      %v734 = vadd.f32 0.0, %v733
      %735 = vdwg.mxu0
      %v736 = vadd.f32 %v655, %v712
      %v737 = vadd.f32 %v656, %v714
      %v738 = vadd.f32 %v657, %v717
      %v739 = vadd.f32 %v658, %v719
      %v740 = vadd.f32 %v659, %v722
      %v741 = vadd.f32 %v660, %v724
      %v742 = vadd.f32 %v661, %v727
      %v743 = vadd.f32 %v662, %v729
      %v744 = vadd.f32 %v663, %v732
      %v745 = vadd.f32 %v664, %v734
      %s746 = sadd.s32 %s195, 21
      %s747 = scalar_lea.vmem %s183, %s746
      %v748 = vld [vmem:[%s747] sm:$0xff]
      %v749 = vld [vmem:[%s747 + $0x8] sm:$0xff]
      %v750 = vld [vmem:[%s747 + $0x10] sm:$0xff]
      %v751 = vld [vmem:[%s747 + $0x18] sm:$0xff]
      %v752 = vld [vmem:[%s747 + $0x20] sm:$0xff]
      %v753 = vld [vmem:[%s747 + $0x28] sm:$0xff]
      %v754 = vld [vmem:[%s747 + $0x30] sm:$0xff]
      %v755 = vld [vmem:[%s747 + $0x38] sm:$0xff]
      %v756 = vld [vmem:[%s747 + $0x40] sm:$0xff]
      %v757 = vld [vmem:[%s747 + $0x48] sm:$0xff]
      %v758 = vpack.c.bf16 %v749, %v748
      %v759 = vpack.c.bf16 %v751, %v750
      %v760 = vpack.c.bf16 %v753, %v752
      %v761 = vpack.c.bf16 %v755, %v754
      %v762 = vpack.c.bf16 %v757, %v756
      %s763 = scalar_lea.vmem %s1, 14
      %v764 = vld [vmem:[%s763] sm:$0x3]
      %v766 = vsel %vm232, %v758, 0
      %v769 = vsel %vm232, %v759, 0
      %v772 = vsel %vm232, %v760, 0
      %v775 = vsel %vm232, %v761, 0
      %v778 = vsel %vm232, %v762, 0
      %v781 = vand.u32 %v764, %v251
      %783 = vmatpush.bf16.msra.mxu0 0
      %784 = vmatpush.bf16.msra.mxu0 0
      %785 = vmatpush.bf16.msra.mxu0 0
      %786 = vmatpush.bf16.msra.mxu0 0
      %787 = vmatpush.bf16.msra.mxu0 0
      %788 = vmatpush.bf16.msra.mxu0 0
      %789 = vmatpush.bf16.msra.mxu0 0
      %790 = vmatpush.bf16.msra.mxu0 %v781
      %791 = vmatmul.bf16.gmra.mxu0 %v766
      %v792 = vpop.f32.mrf.mxu0
      %v793 = vadd.f32 0.0, %v792
      %v794 = vpop.f32.mrf.mxu0
      %v795 = vadd.f32 0.0, %v794
      %796 = vmatmul.bf16.gmra.mxu0 %v769
      %v797 = vpop.f32.mrf.mxu0
      %v798 = vadd.f32 0.0, %v797
      %v799 = vpop.f32.mrf.mxu0
      %v800 = vadd.f32 0.0, %v799
      %801 = vmatmul.bf16.gmra.mxu0 %v772
      %v802 = vpop.f32.mrf.mxu0
      %v803 = vadd.f32 0.0, %v802
      %v804 = vpop.f32.mrf.mxu0
      %v805 = vadd.f32 0.0, %v804
      %806 = vmatmul.bf16.gmra.mxu0 %v775
      %v807 = vpop.f32.mrf.mxu0
      %v808 = vadd.f32 0.0, %v807
      %v809 = vpop.f32.mrf.mxu0
      %v810 = vadd.f32 0.0, %v809
      %811 = vmatmul.bf16.gmra.mxu0 %v778
      %v812 = vpop.f32.mrf.mxu0
      %v813 = vadd.f32 0.0, %v812
      %v814 = vpop.f32.mrf.mxu0
      %v815 = vadd.f32 0.0, %v814
      %816 = vdwg.mxu0
      %v817 = vadd.f32 %v736, %v793
      %v818 = vadd.f32 %v737, %v795
      %v819 = vadd.f32 %v738, %v798
      %v820 = vadd.f32 %v739, %v800
      %v821 = vadd.f32 %v740, %v803
      %v822 = vadd.f32 %v741, %v805
      %v823 = vadd.f32 %v742, %v808
      %v824 = vadd.f32 %v743, %v810
      %v825 = vadd.f32 %v744, %v813
      %v826 = vadd.f32 %v745, %v815
      %s827 = sadd.s32 %s195, 22
      %s828 = scalar_lea.vmem %s183, %s827
      %v829 = vld [vmem:[%s828] sm:$0xff]
      %v830 = vld [vmem:[%s828 + $0x8] sm:$0xff]
      %v831 = vld [vmem:[%s828 + $0x10] sm:$0xff]
      %v832 = vld [vmem:[%s828 + $0x18] sm:$0xff]
      %v833 = vld [vmem:[%s828 + $0x20] sm:$0xff]
      %v834 = vld [vmem:[%s828 + $0x28] sm:$0xff]
      %v835 = vld [vmem:[%s828 + $0x30] sm:$0xff]
      %v836 = vld [vmem:[%s828 + $0x38] sm:$0xff]
      %v837 = vld [vmem:[%s828 + $0x40] sm:$0xff]
      %v838 = vld [vmem:[%s828 + $0x48] sm:$0xff]
      %v839 = vpack.c.bf16 %v830, %v829
      %v840 = vpack.c.bf16 %v832, %v831
      %v841 = vpack.c.bf16 %v834, %v833
      %v842 = vpack.c.bf16 %v836, %v835
      %v843 = vpack.c.bf16 %v838, %v837
      %s844 = scalar_lea.vmem %s1, 16
      %v845 = vld [vmem:[%s844] sm:$0x3]
      %v847 = vsel %vm232, %v839, 0
      %v850 = vsel %vm232, %v840, 0
      %v853 = vsel %vm232, %v841, 0
      %v856 = vsel %vm232, %v842, 0
      %v859 = vsel %vm232, %v843, 0
      %v862 = vand.u32 %v845, %v251
      %864 = vmatpush.bf16.msra.mxu0 0
      %865 = vmatpush.bf16.msra.mxu0 0
      %866 = vmatpush.bf16.msra.mxu0 0
      %867 = vmatpush.bf16.msra.mxu0 0
      %868 = vmatpush.bf16.msra.mxu0 0
      %869 = vmatpush.bf16.msra.mxu0 0
      %870 = vmatpush.bf16.msra.mxu0 0
      %871 = vmatpush.bf16.msra.mxu0 %v862
      %872 = vmatmul.bf16.gmra.mxu0 %v847
      %v873 = vpop.f32.mrf.mxu0
      %v874 = vadd.f32 0.0, %v873
      %v875 = vpop.f32.mrf.mxu0
      %v876 = vadd.f32 0.0, %v875
      %877 = vmatmul.bf16.gmra.mxu0 %v850
      %v878 = vpop.f32.mrf.mxu0
      %v879 = vadd.f32 0.0, %v878
      %v880 = vpop.f32.mrf.mxu0
      %v881 = vadd.f32 0.0, %v880
      %882 = vmatmul.bf16.gmra.mxu0 %v853
      %v883 = vpop.f32.mrf.mxu0
      %v884 = vadd.f32 0.0, %v883
      %v885 = vpop.f32.mrf.mxu0
      %v886 = vadd.f32 0.0, %v885
      %887 = vmatmul.bf16.gmra.mxu0 %v856
      %v888 = vpop.f32.mrf.mxu0
      %v889 = vadd.f32 0.0, %v888
      %v890 = vpop.f32.mrf.mxu0
      %v891 = vadd.f32 0.0, %v890
      %892 = vmatmul.bf16.gmra.mxu0 %v859
      %v893 = vpop.f32.mrf.mxu0
      %v894 = vadd.f32 0.0, %v893
      %v895 = vpop.f32.mrf.mxu0
      %v896 = vadd.f32 0.0, %v895
      %897 = vdwg.mxu0
      %v898 = vadd.f32 %v817, %v874
      %v899 = vadd.f32 %v818, %v876
      %v900 = vadd.f32 %v819, %v879
      %v901 = vadd.f32 %v820, %v881
      %v902 = vadd.f32 %v821, %v884
      %v903 = vadd.f32 %v822, %v886
      %v904 = vadd.f32 %v823, %v889
      %v905 = vadd.f32 %v824, %v891
      %v906 = vadd.f32 %v825, %v894
      %v907 = vadd.f32 %v826, %v896
      %v908 = vld [vmem:[%s2] sm:$0x1]
      %v910 = vperm.slane %v908, 0
      %v912 = vadd.f32 %v898, %v910
      %v913 = vadd.f32 %v899, %v910
      %v914 = vadd.f32 %v900, %v910
      %v915 = vadd.f32 %v901, %v910
      %v916 = vadd.f32 %v902, %v910
      %v917 = vadd.f32 %v903, %v910
      %v918 = vadd.f32 %v904, %v910
      %v919 = vadd.f32 %v905, %v910
      %v920 = vadd.f32 %v906, %v910
      %v921 = vadd.f32 %v907, %v910
      %v922 = vmax.f32 %v912, 0.0
      %v923 = vmax.f32 %v913, 0.0
      %v924 = vmax.f32 %v914, 0.0
      %v925 = vmax.f32 %v915, 0.0
      %v926 = vmax.f32 %v916, 0.0
      %v927 = vmax.f32 %v917, 0.0
      %v928 = vmax.f32 %v918, 0.0
      %v929 = vmax.f32 %v919, 0.0
      %v930 = vmax.f32 %v920, 0.0
      %v931 = vmax.f32 %v921, 0.0
      %vm932 = vcmask 64512
      %933 = vst.msk [vmem:[%s192] sm:$0xff] %vm932, %v922
      %934 = vst.msk [vmem:[%s192 + $0x8] sm:$0xff] %vm932, %v923
      %935 = vst.msk [vmem:[%s192 + $0x10] sm:$0xff] %vm932, %v924
      %936 = vst.msk [vmem:[%s192 + $0x18] sm:$0xff] %vm932, %v925
      %937 = vst.msk [vmem:[%s192 + $0x20] sm:$0xff] %vm932, %v926
      %938 = vst.msk [vmem:[%s192 + $0x28] sm:$0xff] %vm932, %v927
      %939 = vst.msk [vmem:[%s192 + $0x30] sm:$0xff] %vm932, %v928
      %940 = vst.msk [vmem:[%s192 + $0x38] sm:$0xff] %vm932, %v929
      %941 = vst.msk [vmem:[%s192 + $0x40] sm:$0xff] %vm932, %v930
      %942 = vst.msk [vmem:[%s192 + $0x48] sm:$0xff] %vm932, %v931
      %s943 = smul.u32 10, %s19
      %p944 = scmp.lt.s32.totalorder %s18, 1
      %s945 = scalar_select %p944, %s18, 1
      %p946 = scmp.lt.s32.totalorder %s943, 9
      %s947 = scalar_select %p946, %s943, 9
      %s948 = smul.addr %s945, 10
      %s949 = sadd.s32 %s947, %s948
      %s950 = smul.addr %s949, 8
      %s951 = scalar_lea.vmem %s3, %s950
      // Predicated region
      $region33: #{tpu_custom_call.1} parent=31 // pred_check
        %p952 = pneg %p114
      $region34: #{tpu_custom_call.1} parent=31 // pred_check_branch
        %954 = sbr.rel (%p952) target = $region36
      $region35: #{tpu_custom_call.1} parent=31 // pred_region
        %s955 = smul.u32 10, %s19
      $region36: #{tpu_custom_call.1} parent=31 // pred_fallthru
        _
    $region32: #{tpu_custom_call.1} parent=5 // pred_fallthru
      _
    %p956 = scmp.le.s32.totalorder 2, %s9
    // Predicated region
    $region37: #{tpu_custom_call.1} parent=5 // pred_check
      %p957 = pneg %p956
    $region38: #{tpu_custom_call.1} parent=5 // pred_check_branch
      %959 = sbr.rel (%p957) target = $region40
    $region39: #{tpu_custom_call.1} parent=5 // pred_region
      %s960 = ssub.s32 %s9, 2
      // Predicated region
      $region41: #{tpu_custom_call.1} parent=39 // pred_check
        %p961 = pneg %p120
      $region42: #{tpu_custom_call.1} parent=39 // pred_check_branch
        %963 = sbr.rel (%p961) target = $region44
      $region43: #{tpu_custom_call.1} parent=39 // pred_region
        %s964 = smul.u32 10, %s21
        %p965 = scmp.lt.s32.totalorder %s20, 1
        %s966 = scalar_select %p965, %s20, 1
        %p967 = scmp.lt.s32.totalorder %s964, 9
        %s968 = scalar_select %p967, %s964, 9
        %s969 = smul.addr %s966, 10
        %s970 = sadd.s32 %s968, %s969
        %s971 = smul.addr %s970, 8
        %s972 = scalar_lea.vmem %s3, %s971
      $region44: #{tpu_custom_call.1} parent=39 // pred_fallthru
        _
    $region40: #{tpu_custom_call.1} parent=5 // pred_fallthru
      _
  $region6: #{tpu_custom_call.1} parent=0 // loop_footer
    %s13 = sadd.s32 1, %s9
  $region7: #{tpu_custom_call.1} parent=0 // loop_footer_branch
    %8 = sbr.rel target = $region3
  $region8: #{tpu_custom_call.1} parent=0 // loop_exit
    _

</llo_original>
